<compile_context>
chip_gen: v5e
topology: v5e:2x2
jax: 0.10.0
libtpu: 0.0.40
codegen_flags: <defaults>
</compile_context>

<pallas_src>
import math
import functools

import jax
import jax.numpy as jnp
from jax.experimental import pallas as pl
from jax.experimental.pallas import tpu as pltpu


def _grouped_linear_kernel(x_ref, w_ref, b_ref, o_ref, *, groups, cin_g, cout_g):
    # x_ref: (TN, in_channels), w_ref: (G, cin_g, cout_g),
    # b_ref: (1, out_channels),  o_ref: (TN, out_channels)
    x = x_ref[...]
    if groups == 1:
        acc = jnp.dot(x, w_ref[0], preferred_element_type=jnp.float32)
    else:
        parts = []
        for g in range(groups):  # static, unrolled over the (small) group count
            xg = x[:, g * cin_g:(g + 1) * cin_g]
            parts.append(jnp.dot(xg, w_ref[g], preferred_element_type=jnp.float32))
        acc = jnp.concatenate(parts, axis=-1)
    # Single bias add on the f32 accumulator, then one lane-dense store.
    o_ref[...] = (acc + b_ref[...].astype(jnp.float32)).astype(o_ref.dtype)


def _pick_row_tile(n_rows, in_ch, out_ch, itemsize):
    """Row tile sized so double-buffered x/out tiles stay well under VMEM."""
    budget = 16 * 1024 * 1024          # conservative: fits v7x scoped VMEM
    per_row = 2 * (in_ch + out_ch) * max(int(itemsize), 4)
    tn = budget // per_row
    tn = max(8, min(1024, (tn // 8) * 8))
    if n_rows <= tn:
        return n_rows                   # single full-dim block (always legal)
    return tn


@jax.jit
def linear_forward(src, weight, bias):
    """Equivalent of Linear.forward(src).

    src:    (..., in_channels)
    weight: (groups, in_channels // groups, out_channels // groups)
    bias:   (out_channels,)
    """
    G, cin_g, cout_g = weight.shape
    in_channels = G * cin_g
    out_channels = G * cout_g
    lead_shape = src.shape[:-1]

    x = src.reshape(-1, in_channels)    # no-op reshape, no HBM copy
    N = x.shape[0]
    itemsize = jnp.dtype(src.dtype).itemsize
    TN = _pick_row_tile(N, in_channels, out_channels, itemsize)
    grid = (pl.cdiv(N, TN),)
    b2 = bias.reshape(1, out_channels)

    kernel = functools.partial(_grouped_linear_kernel,
                               groups=G, cin_g=cin_g, cout_g=cout_g)

    flops = 2 * N * in_channels * cout_g           # = 2*N*in*out/G
    bytes_accessed = (N * in_channels + G * cin_g * cout_g
                      + out_channels + N * out_channels) * int(itemsize)

    out = pl.pallas_call(
        kernel,
        out_shape=jax.ShapeDtypeStruct((N, out_channels), src.dtype),
        grid_spec=pltpu.PrefetchScalarGridSpec(
            num_scalar_prefetch=0,
            grid=grid,
            in_specs=[
                # row tile of the full-width activation slab
                pl.BlockSpec((TN, in_channels), lambda n: (n, 0)),
                # weights + bias: constant block index -> resident, no re-DMA
                pl.BlockSpec((G, cin_g, cout_g), lambda n: (0, 0, 0)),
                pl.BlockSpec((1, out_channels), lambda n: (0, 0)),
            ],
            out_specs=pl.BlockSpec((TN, out_channels), lambda n: (n, 0)),
        ),
        compiler_params=pltpu.CompilerParams(
            dimension_semantics=("parallel",)),
        cost_estimate=pl.CostEstimate(
            flops=flops, transcendentals=0, bytes_accessed=bytes_accessed),
    )(x, weight, b2)

    return out.reshape(*lead_shape, out_channels)


def init_params(key, in_channels, out_channels, groups):
    """Deterministic re-implementation of reset_parameters()."""
    cin_g = in_channels // groups
    cout_g = out_channels // groups
    kw, kb = jax.random.split(key)
    # kaiming_uniform(weight, fan=cin_g, a=sqrt(5)) -> bound = sqrt(6/((1+a^2)*fan))
    w_bound = math.sqrt(6.0 / ((1.0 + 5.0) * cin_g))
    weight = jax.random.uniform(kw, (groups, cin_g, cout_g), jnp.float32,
                                minval=-w_bound, maxval=w_bound)
    # uniform(size=cin_g, bias) -> bound = 1/sqrt(cin_g)
    b_bound = 1.0 / math.sqrt(cin_g)
    bias = jax.random.uniform(kb, (out_channels,), jnp.float32,
                              minval=-b_bound, maxval=b_bound)
    return weight, bias


def _reference(src, weight, bias):
    G, cin_g, cout_g = weight.shape
    out_channels = G * cout_g
    lead = src.shape[:-1]
    xg = src.reshape(-1, G, cin_g).transpose(1, 0, 2)       # (G, N, cin_g)
    out = jnp.matmul(xg, weight).transpose(1, 0, 2)          # (N, G, cout_g)
    return out.reshape(*lead, out_channels) + bias


if __name__ == "__main__":
    key = jax.random.PRNGKey(0)
    k_x, k_p1, k_p2 = jax.random.split(key, 3)

    batch, seq = 2, 8
    in_channels, out_channels = 32, 32

    src = jax.random.normal(k_x, (batch, seq, in_channels), jnp.float32)

    ok = True

    # grouped case (groups=4)
    w4, b4 = init_params(k_p1, in_channels, out_channels, groups=4)
    out4 = jax.block_until_ready(linear_forward(src, w4, b4))
    ref4 = _reference(src, w4, b4)
    ok &= out4.shape == (batch, seq, out_channels)
    ok &= bool(jnp.allclose(out4, ref4, atol=1e-5, rtol=1e-5))

    # dense case (groups=1)
    w1, b1 = init_params(k_p2, in_channels, out_channels, groups=1)
    out1 = jax.block_until_ready(linear_forward(src, w1, b1))
    ref1 = _reference(src, w1, b1)
    ok &= out1.shape == (batch, seq, out_channels)
    ok &= bool(jnp.allclose(out1, ref1, atol=1e-5, rtol=1e-5))

    assert ok
    print("KERNEL_OK")
</pallas_src>

<mosaic_0001>
module attributes {stable_mosaic.version = 11 : i64} {
  func.func @_grouped_linear_kernel(%arg0: i32, %arg1: memref<16x32xf32, #tpu.memory_space<vmem>>, %arg2: memref<4x8x8xf32, #tpu.memory_space<vmem>>, %arg3: memref<1x32xf32, #tpu.memory_space<vmem>>, %arg4: memref<16x32xf32, #tpu.memory_space<vmem>>) attributes {dimension_semantics = [#tpu.dimension_semantics<parallel>], iteration_bounds = array<i64: 1>, scalar_prefetch = 0 : i64, scratch_operands = 0 : i64, tpu.core_type = #tpu.core_type<tc>, window_params = [{transform_indices = @transform_0, window_bounds = array<i64: 16, 32>}, {pipeline_mode = #tpu.pipeline_mode<synchronous>, transform_indices = @transform_1, window_bounds = array<i64: 4, 8, 8>}, {pipeline_mode = #tpu.pipeline_mode<synchronous>, transform_indices = @transform_2, window_bounds = array<i64: 1, 32>}, {transform_indices = @transform_3, window_bounds = array<i64: 16, 32>}]} {
    %c0 = arith.constant 0 : index
    %c0_0 = arith.constant 0 : index
    %0 = vector.load %arg1[%c0, %c0_0] : memref<16x32xf32, #tpu.memory_space<vmem>>, vector<16x32xf32>
    %1 = vector.extract_strided_slice %0 {offsets = [0, 0], sizes = [16, 8], strides = [1, 1]} : vector<16x32xf32> to vector<16x8xf32>
    %c0_1 = arith.constant 0 : index
    %c0_2 = arith.constant 0 : index
    %c0_3 = arith.constant 0 : index
    %2 = vector.load %arg2[%c0_1, %c0_2, %c0_3] : memref<4x8x8xf32, #tpu.memory_space<vmem>>, vector<1x8x8xf32>
    %3 = vector.shape_cast %2 : vector<1x8x8xf32> to vector<8x8xf32>
    %cst = arith.constant dense<0.000000e+00> : vector<16x8xf32>
    %4 = tpu.matmul %1, %3, %cst {dimension_numbers = #tpu.dot_dimension_numbers<[1], [0], [0], [1], [0, 0, 1, 1], [], []>} : vector<16x8xf32>, vector<8x8xf32>, vector<16x8xf32> -> vector<16x8xf32>
    %5 = vector.extract_strided_slice %0 {offsets = [0, 8], sizes = [16, 8], strides = [1, 1]} : vector<16x32xf32> to vector<16x8xf32>
    %c1 = arith.constant 1 : index
    %c0_4 = arith.constant 0 : index
    %c0_5 = arith.constant 0 : index
    %6 = vector.load %arg2[%c1, %c0_4, %c0_5] : memref<4x8x8xf32, #tpu.memory_space<vmem>>, vector<1x8x8xf32>
    %7 = vector.shape_cast %6 : vector<1x8x8xf32> to vector<8x8xf32>
    %cst_6 = arith.constant dense<0.000000e+00> : vector<16x8xf32>
    %8 = tpu.matmul %5, %7, %cst_6 {dimension_numbers = #tpu.dot_dimension_numbers<[1], [0], [0], [1], [0, 0, 1, 1], [], []>} : vector<16x8xf32>, vector<8x8xf32>, vector<16x8xf32> -> vector<16x8xf32>
    %9 = vector.extract_strided_slice %0 {offsets = [0, 16], sizes = [16, 8], strides = [1, 1]} : vector<16x32xf32> to vector<16x8xf32>
    %c2 = arith.constant 2 : index
    %c0_7 = arith.constant 0 : index
    %c0_8 = arith.constant 0 : index
    %10 = vector.load %arg2[%c2, %c0_7, %c0_8] : memref<4x8x8xf32, #tpu.memory_space<vmem>>, vector<1x8x8xf32>
    %11 = vector.shape_cast %10 : vector<1x8x8xf32> to vector<8x8xf32>
    %cst_9 = arith.constant dense<0.000000e+00> : vector<16x8xf32>
    %12 = tpu.matmul %9, %11, %cst_9 {dimension_numbers = #tpu.dot_dimension_numbers<[1], [0], [0], [1], [0, 0, 1, 1], [], []>} : vector<16x8xf32>, vector<8x8xf32>, vector<16x8xf32> -> vector<16x8xf32>
    %13 = vector.extract_strided_slice %0 {offsets = [0, 24], sizes = [16, 8], strides = [1, 1]} : vector<16x32xf32> to vector<16x8xf32>
    %c3 = arith.constant 3 : index
    %c0_10 = arith.constant 0 : index
    %c0_11 = arith.constant 0 : index
    %14 = vector.load %arg2[%c3, %c0_10, %c0_11] : memref<4x8x8xf32, #tpu.memory_space<vmem>>, vector<1x8x8xf32>
    %15 = vector.shape_cast %14 : vector<1x8x8xf32> to vector<8x8xf32>
    %cst_12 = arith.constant dense<0.000000e+00> : vector<16x8xf32>
    %16 = tpu.matmul %13, %15, %cst_12 {dimension_numbers = #tpu.dot_dimension_numbers<[1], [0], [0], [1], [0, 0, 1, 1], [], []>} : vector<16x8xf32>, vector<8x8xf32>, vector<16x8xf32> -> vector<16x8xf32>
    %17 = tpu.concatenate %4, %8, %12, %16 in 1 : vector<16x8xf32>, vector<16x8xf32>, vector<16x8xf32>, vector<16x8xf32> -> vector<16x32xf32>
    %c0_13 = arith.constant 0 : index
    %c0_14 = arith.constant 0 : index
    %18 = vector.load %arg3[%c0_13, %c0_14] : memref<1x32xf32, #tpu.memory_space<vmem>>, vector<1x32xf32>
    %19 = vector.broadcast %18 : vector<1x32xf32> to vector<16x32xf32>
    %20 = arith.addf %17, %19 : vector<16x32xf32>
    %c0_15 = arith.constant 0 : index
    %c0_16 = arith.constant 0 : index
    %21 = vector.load %arg4[%c0_15, %c0_16] : memref<16x32xf32, #tpu.memory_space<vmem>>, vector<16x32xf32>
    tpu.vector_store %arg4[%c0_15, %c0_16], %20 {strides = array<i32>} : memref<16x32xf32, #tpu.memory_space<vmem>>, vector<16x32xf32>,
    return
  }
  func.func @transform_0(%arg0: i32) -> (i32, i32) {
    %c0_i32 = arith.constant 0 : i32
    %c0_i32_0 = arith.constant 0 : i32
    return %arg0, %c0_i32 : i32, i32
  }
  func.func @transform_1(%arg0: i32) -> (i32, i32, i32) {
    %c0_i32 = arith.constant 0 : i32
    %c0_i32_0 = arith.constant 0 : i32
    %c0_i32_1 = arith.constant 0 : i32
    %c0_i32_2 = arith.constant 0 : i32
    return %c0_i32, %c0_i32_0, %c0_i32_1 : i32, i32, i32
  }
  func.func @transform_2(%arg0: i32) -> (i32, i32) {
    %c0_i32 = arith.constant 0 : i32
    %c0_i32_0 = arith.constant 0 : i32
    %c0_i32_1 = arith.constant 0 : i32
    return %c0_i32, %c0_i32_0 : i32, i32
  }
  func.func @transform_3(%arg0: i32) -> (i32, i32) {
    %c0_i32 = arith.constant 0 : i32
    %c0_i32_0 = arith.constant 0 : i32
    return %arg0, %c0_i32 : i32, i32
  }
}

</mosaic_0001>

<llo_original>
// kernel: linear_forward.1
$region0: #{linear_forward.1}
  #allocation0 [shape = 'u32[]', space=smem, size = 0x4, offset = 0x4, fixed_abs, tag = 'smem constant byte address 0x4 - core index']
  #allocation1 [shape = 'u32[72,128]{1,0:T(1,128)}', space=vmem, size = 0x9000, scoped, tag = 'internal scratch']
  %s0 = inlined_call_operand.hbm [shape: f32[16,32], index: 0, kind: input, shape index: {}]
  %s1 = inlined_call_operand.hbm [shape: f32[4,8,8], index: 1, kind: input, shape index: {}]
  %s2 = inlined_call_operand.vmem [shape: f32[1,32], index: 2, kind: input, shape index: {}]
  %s3 = inlined_call_operand.hbm [shape: f32[16,32], index: 3, kind: output, shape index: {}]
  %s4 = sld [smem:[#allocation0]]
  $region30: #{linear_forward.1} parent=0
    _
  %s6 = ssub.s32 1, %s4
  %s7 = scalar_select 0, %s6, %s4
  $region1: #{linear_forward.1} parent=0
    #allocation2 [shape = 'u8[8192]{0}', space=vmem, size = 0x2000, scoped, tag = 'input window, operand 0, single buffered']
    #allocation3 [shape = 's32[1]{0}', space=sflag, size = 0x4, scoped, tag = 'scoped memory for linear_forward.1']
    #allocation4 [shape = 's32[1]{0}', space=sflag, size = 0x4, scoped, tag = 'scoped memory for linear_forward.1']
    #allocation5 [shape = 'u8[16384]{0}', space=vmem, size = 0x4000, scoped, tag = 'input window, operand 1, single buffered']
    #allocation6 [shape = 's32[1]{0}', space=sflag, size = 0x4, scoped, tag = 'scoped memory for linear_forward.1']
    #allocation7 [shape = 'u8[8192]{0}', space=vmem, size = 0x2000, scoped, tag = 'output window, operand 0, single buffered']
    %8 = vsyncpa [#allocation3], 0
    %9 = vsyncpa [#allocation6], 0
    %10 = vsyncpa [#allocation4], 0
    // Predicated region
    $region2: #{linear_forward.1} parent=1 // pred_check
      _
    $region3: #{linear_forward.1} parent=1 // pred_check_branch
      %12 = sbr.rel (0) target = $region5
    $region4: #{linear_forward.1} parent=1 // pred_region
      %14 = vsyncadd [#allocation3], 0
      %s15 = sshll.u32 %s0, 4
      %s16 = int_to_ptr.hbm [resolvable:$true] %s15
      %s17 = sshll.u32 [#allocation2], 4
      %s18 = int_to_ptr.vmem [resolvable:$true] %s17
      %23 = dma.hbm_to_vmem [thread:$0]  %s16, 256, %s18, [#allocation3], 128, 128, 8
    $region5: #{linear_forward.1} parent=1 // pred_fallthru
      _
    // Predicated region
    $region6: #{linear_forward.1} parent=1 // pred_check
      _
    $region7: #{linear_forward.1} parent=1 // pred_check_branch
      %25 = sbr.rel (0) target = $region9
    $region8: #{linear_forward.1} parent=1 // pred_region
      %27 = vsyncadd [#allocation6], 0
      %s28 = sshll.u32 %s1, 4
      %s29 = int_to_ptr.hbm [resolvable:$true] %s28
      %s30 = sshll.u32 [#allocation5], 4
      %s31 = int_to_ptr.vmem [resolvable:$true] %s30
      %36 = dma.hbm_to_vmem [thread:$0]  %s29, 512, %s31, [#allocation6], 128, 128, 8
    $region9: #{linear_forward.1} parent=1 // pred_fallthru
      _
    // Predicated region
    $region10: #{linear_forward.1} parent=1 // pred_check
      _
    $region11: #{linear_forward.1} parent=1 // pred_check_branch
      %38 = sbr.rel (0) target = $region13
    $region12: #{linear_forward.1} parent=1 // pred_region
      _
    $region13: #{linear_forward.1} parent=1 // pred_fallthru
      _
    // Predicated region
    $region14: #{linear_forward.1} parent=1 // pred_check
      _
    $region15: #{linear_forward.1} parent=1 // pred_check_branch
      %40 = sbr.rel (0) target = $region17
    $region16: #{linear_forward.1} parent=1 // pred_region
      %42 = dma.done [#allocation3], 256
    $region17: #{linear_forward.1} parent=1 // pred_fallthru
      _
    // Predicated region
    $region18: #{linear_forward.1} parent=1 // pred_check
      _
    $region19: #{linear_forward.1} parent=1 // pred_check_branch
      %44 = sbr.rel (0) target = $region21
    $region20: #{linear_forward.1} parent=1 // pred_region
      %46 = dma.done [#allocation6], 512
    $region21: #{linear_forward.1} parent=1 // pred_fallthru
      _
    %v47 = vld [vmem:[#allocation2] sm:$0xff]
    %v48 = vld [vmem:[#allocation2 + $0x8] sm:$0xff]
    %v49 = vld [vmem:[#allocation5] sm:$0xff]
    %vm50 = vcmask 64512
    %v52 = vsel %vm50, %v47, 0
    %v55 = vsel %vm50, %v48, 0
    %57 = vmatpush.msra.mxu0 0.0
    %58 = vmatpush.msra.mxu0 0.0
    %59 = vmatpush.msra.mxu0 0.0
    %60 = vmatpush.msra.mxu0 0.0
    %61 = vmatpush.msra.mxu0 0.0
    %62 = vmatpush.msra.mxu0 0.0
    %63 = vmatpush.msra.mxu0 0.0
    %64 = vmatpush.msra.mxu0 0.0
    %65 = vmatpush.msra.mxu0 0.0
    %66 = vmatpush.msra.mxu0 0.0
    %67 = vmatpush.msra.mxu0 0.0
    %68 = vmatpush.msra.mxu0 0.0
    %69 = vmatpush.msra.mxu0 0.0
    %70 = vmatpush.msra.mxu0 0.0
    %71 = vmatpush.msra.mxu0 0.0
    %72 = vmatpush.msra.mxu0 %v49
    %73 = vmatmul.f32.gmra.mxu0 %v52
    %v74 = vpop.f32.mrf.mxu0
    %v75 = vadd.f32 0.0, %v74
    %76 = vmatmul.f32.gmra.mxu0 %v55
    %v77 = vpop.f32.mrf.mxu0
    %v78 = vadd.f32 0.0, %v77
    %79 = vdwg.mxu0
    %s80 = scalar_lea.vmem [#allocation5], 8
    %v81 = vld [vmem:[%s80] sm:$0xff]
    %82 = vrot.lane.b32.xlu0 %v47, 120
    %v83 = vpop.permute.xlu0 %82
    %84 = vrot.lane.b32.xlu0 %v48, 120
    %v85 = vpop.permute.xlu0 %84
    %v86 = vsel %vm50, %v83, 0
    %v88 = vsel %vm50, %v85, 0
    %90 = vmatpush.msra.mxu0 0.0
    %91 = vmatpush.msra.mxu0 0.0
    %92 = vmatpush.msra.mxu0 0.0
    %93 = vmatpush.msra.mxu0 0.0
    %94 = vmatpush.msra.mxu0 0.0
    %95 = vmatpush.msra.mxu0 0.0
    %96 = vmatpush.msra.mxu0 0.0
    %97 = vmatpush.msra.mxu0 0.0
    %98 = vmatpush.msra.mxu0 0.0
    %99 = vmatpush.msra.mxu0 0.0
    %100 = vmatpush.msra.mxu0 0.0
    %101 = vmatpush.msra.mxu0 0.0
    %102 = vmatpush.msra.mxu0 0.0
    %103 = vmatpush.msra.mxu0 0.0
    %104 = vmatpush.msra.mxu0 0.0
    %105 = vmatpush.msra.mxu0 %v81
    %106 = vmatmul.f32.gmra.mxu0 %v86
    %v107 = vpop.f32.mrf.mxu0
    %v108 = vadd.f32 0.0, %v107
    %109 = vmatmul.f32.gmra.mxu0 %v88
    %v110 = vpop.f32.mrf.mxu0
    %v111 = vadd.f32 0.0, %v110
    %112 = vdwg.mxu0
    %s113 = scalar_lea.vmem [#allocation5], 16
    %v114 = vld [vmem:[%s113] sm:$0xff]
    %115 = vrot.lane.b32.xlu0 %v47, 112
    %v116 = vpop.permute.xlu0 %115
    %117 = vrot.lane.b32.xlu0 %v48, 112
    %v118 = vpop.permute.xlu0 %117
    %v119 = vsel %vm50, %v116, 0
    %v121 = vsel %vm50, %v118, 0
    %123 = vmatpush.msra.mxu0 0.0
    %124 = vmatpush.msra.mxu0 0.0
    %125 = vmatpush.msra.mxu0 0.0
    %126 = vmatpush.msra.mxu0 0.0
    %127 = vmatpush.msra.mxu0 0.0
    %128 = vmatpush.msra.mxu0 0.0
    %129 = vmatpush.msra.mxu0 0.0
    %130 = vmatpush.msra.mxu0 0.0
    %131 = vmatpush.msra.mxu0 0.0
    %132 = vmatpush.msra.mxu0 0.0
    %133 = vmatpush.msra.mxu0 0.0
    %134 = vmatpush.msra.mxu0 0.0
    %135 = vmatpush.msra.mxu0 0.0
    %136 = vmatpush.msra.mxu0 0.0
    %137 = vmatpush.msra.mxu0 0.0
    %138 = vmatpush.msra.mxu0 %v114
    %139 = vmatmul.f32.gmra.mxu0 %v119
    %v140 = vpop.f32.mrf.mxu0
    %v141 = vadd.f32 0.0, %v140
    %142 = vmatmul.f32.gmra.mxu0 %v121
    %v143 = vpop.f32.mrf.mxu0
    %v144 = vadd.f32 0.0, %v143
    %145 = vdwg.mxu0
    %s146 = scalar_lea.vmem [#allocation5], 24
    %v147 = vld [vmem:[%s146] sm:$0xff]
    %148 = vrot.lane.b32.xlu0 %v47, 104
    %v149 = vpop.permute.xlu0 %148
    %150 = vrot.lane.b32.xlu0 %v48, 104
    %v151 = vpop.permute.xlu0 %150
    %v152 = vsel %vm50, %v149, 0
    %v154 = vsel %vm50, %v151, 0
    %156 = vmatpush.msra.mxu0 0.0
    %157 = vmatpush.msra.mxu0 0.0
    %158 = vmatpush.msra.mxu0 0.0
    %159 = vmatpush.msra.mxu0 0.0
    %160 = vmatpush.msra.mxu0 0.0
    %161 = vmatpush.msra.mxu0 0.0
    %162 = vmatpush.msra.mxu0 0.0
    %163 = vmatpush.msra.mxu0 0.0
    %164 = vmatpush.msra.mxu0 0.0
    %165 = vmatpush.msra.mxu0 0.0
    %166 = vmatpush.msra.mxu0 0.0
    %167 = vmatpush.msra.mxu0 0.0
    %168 = vmatpush.msra.mxu0 0.0
    %169 = vmatpush.msra.mxu0 0.0
    %170 = vmatpush.msra.mxu0 0.0
    %171 = vmatpush.msra.mxu0 %v147
    %172 = vmatmul.f32.gmra.mxu0 %v152
    %v173 = vpop.f32.mrf.mxu0
    %v174 = vadd.f32 0.0, %v173
    %175 = vmatmul.f32.gmra.mxu0 %v154
    %v176 = vpop.f32.mrf.mxu0
    %v177 = vadd.f32 0.0, %v176
    %178 = vdwg.mxu0
    %181 = vrot.lane.b32.xlu0 %v108, 8
    %v182 = vpop.permute.xlu0 %181
    %183 = vrot.lane.b32.xlu0 %v111, 8
    %v184 = vpop.permute.xlu0 %183
    %189 = vrot.lane.b32.xlu0 %v141, 16
    %v190 = vpop.permute.xlu0 %189
    %191 = vrot.lane.b32.xlu0 %v144, 16
    %v192 = vpop.permute.xlu0 %191
    %197 = vrot.lane.b32.xlu0 %v174, 24
    %v198 = vpop.permute.xlu0 %197
    %199 = vrot.lane.b32.xlu0 %v177, 24
    %v200 = vpop.permute.xlu0 %199
    %v203 = vsel %vm50, %v75, %v182
    %v204 = vsel %vm50, %v78, %v184
    %vm205 = vcmask 130048
    %v206 = vsel %vm205, %v203, %v190
    %v207 = vsel %vm205, %v204, %v192
    %vm208 = vcmask 195584
    %v209 = vsel %vm208, %v206, %v198
    %v210 = vsel %vm208, %v207, %v200
    %v211 = vld [vmem:[%s2] sm:$0x1]
    %v213 = vperm.slane %v211, 0
    %v215 = vadd.f32 %v209, %v213
    %v216 = vadd.f32 %v210, %v213
    %vm217 = vcmask 261120
    %218 = vst.msk [vmem:[#allocation7] sm:$0xff] %vm217, %v215
    %219 = vst.msk [vmem:[#allocation7 + $0x8] sm:$0xff] %vm217, %v216
    // Predicated region
    $region22: #{linear_forward.1} parent=1 // pred_check
      _
    $region23: #{linear_forward.1} parent=1 // pred_check_branch
      %221 = sbr.rel (0) target = $region25
    $region24: #{linear_forward.1} parent=1 // pred_region
      %223 = vsyncadd [#allocation4], 0
      %s224 = sshll.u32 [#allocation7], 4
      %s225 = int_to_ptr.vmem [resolvable:$true] %s224
      %s226 = sshll.u32 %s3, 4
      %s227 = int_to_ptr.hbm [resolvable:$true] %s226
      %232 = dma.vmem_to_hbm [thread:$0]  %s225, 256, %s227, [#allocation4], 128, 128, 8
    $region25: #{linear_forward.1} parent=1 // pred_fallthru
      _
    // Predicated region
    $region26: #{linear_forward.1} parent=1 // pred_check
      _
    $region27: #{linear_forward.1} parent=1 // pred_check_branch
      %234 = sbr.rel (0) target = $region29
    $region28: #{linear_forward.1} parent=1 // pred_region
      %236 = dma.done [#allocation4], 256
    $region29: #{linear_forward.1} parent=1 // pred_fallthru
      _
    %237 = vsyncpa [#allocation3], 1
    %238 = vsyncpa [#allocation6], 1
    %239 = vsyncpa [#allocation4], 1

</llo_original>
